<compile_context>
chip_gen: v6e
topology: v6e:2x2x1
jax: 0.10.0
libtpu: 0.0.40
codegen_flags: <defaults>
</compile_context>

<pallas_src>
import jax
import jax.numpy as jnp
from jax import lax
from jax.experimental import pallas as pl
from jax.experimental.pallas import tpu as pltpu

EPS = 1e-5


def _round_up(x, m):
    return ((x + m - 1) // m) * m


def _stats_kernel(x_ref, g_ref, sx_ref):
    """Accumulate Cin-sized sufficient statistics of x over spatial tiles.

    x_ref : (Cin, TS)   channels on sublanes, spatial on lanes, native dtype
    g_ref : (Cin, Cin)  f32 Gram accumulator   G  += x @ x^T
    sx_ref: (Cin, 1)    f32 row-sum accumulator sx += sum_lanes(x)
    Both accumulators are revisited across the last ("arbitrary") grid axis.
    """
    @pl.when(pl.program_id(2) == 0)
    def _init():
        g_ref[...] = jnp.zeros_like(g_ref)
        sx_ref[...] = jnp.zeros_like(sx_ref)

    x = x_ref[...]
    g_ref[...] += lax.dot_general(
        x, x, (((1,), (1,)), ((), ())), preferred_element_type=jnp.float32)
    sx_ref[...] += jnp.sum(x.astype(jnp.float32), axis=1, keepdims=True)


def _apply_kernel(x_ref, w_ref, shift_ref, o_ref):
    """out_tile = (scale*W) @ x_tile + shift  -- BN affine + conv bias folded into W/shift."""
    y = jnp.dot(w_ref[...], x_ref[...], preferred_element_type=jnp.float32)
    o_ref[...] = (y + shift_ref[...]).astype(o_ref.dtype)


def _pick_spatial_tile(s_pad128, max_ts):
    """Largest multiple-of-128 lane tile <= max_ts; prefer an exact divisor of s_pad128."""
    cap = max(128, min((max_ts // 128) * 128, s_pad128))
    ts = cap
    while ts >= 128:
        if s_pad128 % ts == 0:
            if ts >= 512 or ts == cap:
                return ts          # exact divisor, big enough (or the best we can do)
            break                  # divisor too small -> accept padding with a big tile
        ts -= 128
    return cap


def res_shortcut(x_nchw, conv_w, conv_b, bn_gamma, bn_beta, *, eps=EPS):
    """x_nchw: (N, Cin, H, W); conv_w: (Cout, Cin, 1, 1); conv_b/bn_*: (Cout,)."""
    N, Cin, H, W = x_nchw.shape
    Cout = conv_w.shape[0]
    S = H * W
    M = N * S

    in_dtype = x_nchw.dtype
    out_dtype = in_dtype
    compute_dtype = in_dtype if in_dtype in (jnp.bfloat16, jnp.float16) else jnp.float32

    # Free reshape only (channels -> sublanes, spatial -> lanes). No up-cast copy of x.
    x3 = x_nchw.reshape(N, Cin, S)
    w32 = conv_w.reshape(Cout, Cin).astype(jnp.float32)
    b32 = conv_b.astype(jnp.float32)
    gamma32 = bn_gamma.astype(jnp.float32)
    beta32 = bn_beta.astype(jnp.float32)

    # ---- generation-aware spatial tile / VMEM budget ----
    in_bytes = jnp.dtype(in_dtype).itemsize
    out_bytes = jnp.dtype(out_dtype).itemsize
    try:
        vmem_cap = int(getattr(pltpu.get_tpu_info(), "vmem_capacity_bytes", 64 << 20))
    except Exception:
        vmem_cap = 64 << 20                       # conservative: v7x per-core VMEM
    budget = int(vmem_cap * 0.55)

    w_bytes = Cout * Cin * 4 + Cout * 4
    per_lane = 2 * (Cin * in_bytes + Cout * out_bytes)   # double-buffered x + out tiles
    max_ts = max(128, (budget - w_bytes) // max(per_lane, 1))

    s_pad128 = _round_up(S, 128)
    TS = _pick_spatial_tile(s_pad128, min(max_ts, 8192))
    S_pad = _round_up(s_pad128, TS)
    n_blocks = S_pad // TS

    if S_pad != S:
        # Zero padding is safe: padded columns contribute nothing to G / sx, and all
        # moment formulas below use the real element count M.
        x3 = jnp.pad(x3, ((0, 0), (0, 0), (0, S_pad - S)))

    foot2 = per_lane * TS + w_bytes + Cout * 4
    foot1 = 2 * Cin * in_bytes * TS + 4 * Cin * (Cin + 1) * 4
    vmem_limit = int(min(max(int(1.3 * max(foot1, foot2)) + (2 << 20), 16 << 20),
                         int(vmem_cap * 0.9)))

    # ---------- Pass 1: Cin-sized sufficient statistics (Gram + row sums) ----------
    halves = 2 if (n_blocks % 2 == 0 and n_blocks >= 2) else 1   # megacore split for N==1/odd N
    bph = n_blocks // halves

    x_spec1 = pl.BlockSpec((None, Cin, TS), lambda n, p, s: (n, 0, p * bph + s))
    g_spec = pl.BlockSpec((None, None, Cin, Cin), lambda n, p, s: (n, p, 0, 0))
    sx_spec = pl.BlockSpec((None, None, Cin, 1), lambda n, p, s: (n, p, 0, 0))

    g_parts, sx_parts = pl.pallas_call(
        _stats_kernel,
        grid=(N, halves, bph),
        in_specs=[x_spec1],
        out_specs=[g_spec, sx_spec],
        out_shape=[
            jax.ShapeDtypeStruct((N, halves, Cin, Cin), jnp.float32),
            jax.ShapeDtypeStruct((N, halves, Cin, 1), jnp.float32),
        ],
        compiler_params=pltpu.CompilerParams(
            dimension_semantics=("parallel", "parallel", "arbitrary"),
            vmem_limit_bytes=vmem_limit,
        ),
    )(x3)

    # Tiny per-channel math in the wrapper (O(Cin^2 * Cout) work, negligible vs HBM traffic).
    G = jnp.sum(g_parts, axis=(0, 1))             # (Cin, Cin)
    sx = jnp.sum(sx_parts, axis=(0, 1))[:, 0]     # (Cin,)

    wsx = w32 @ sx                                # (Cout,)  = sum over (N,H,W) of W@x
    mean = (wsx + b32 * M) / M
    sum_yy = jnp.einsum("ci,ij,cj->c", w32, G, w32) + 2.0 * b32 * wsx + M * b32 * b32
    var = jnp.maximum(sum_yy / M - mean * mean, 0.0)   # biased variance (PyTorch BN fwd)

    scale = gamma32 * lax.rsqrt(var + eps)        # (Cout,)
    shift = (beta32 + (b32 - mean) * scale).reshape(Cout, 1)   # conv bias folded in (f32)
    w_scaled = (w32 * scale[:, None]).astype(compute_dtype)    # (Cout, Cin)

    # ---------- Pass 2: out = (scale*W) @ x + shift, lane-dense (Cout, TS) tiles ----------
    out3 = pl.pallas_call(
        _apply_kernel,
        grid=(N, n_blocks),
        in_specs=[
            pl.BlockSpec((None, Cin, TS), lambda n, s: (n, 0, s)),
            pl.BlockSpec((Cout, Cin), lambda n, s: (0, 0)),
            pl.BlockSpec((Cout, 1), lambda n, s: (0, 0)),
        ],
        out_specs=pl.BlockSpec((None, Cout, TS), lambda n, s: (n, 0, s)),
        out_shape=jax.ShapeDtypeStruct((N, Cout, S_pad), out_dtype),
        compiler_params=pltpu.CompilerParams(
            dimension_semantics=("parallel", "parallel"),
            vmem_limit_bytes=vmem_limit,
        ),
    )(x3, w_scaled, shift)

    if S_pad != S:
        out3 = out3[:, :, :S]
    return out3.reshape(N, Cout, H, W)


def _reference(x_nchw, conv_w, conv_b, bn_gamma, bn_beta):
    # Pure-JAX reference for sanity checking.
    y = jnp.einsum("nchw,oc->nohw", x_nchw.astype(jnp.float32),
                   conv_w.reshape(conv_w.shape[0], -1).astype(jnp.float32))
    y = y + conv_b[None, :, None, None]
    mean = jnp.mean(y, axis=(0, 2, 3), keepdims=True)
    var = jnp.mean((y - mean) ** 2, axis=(0, 2, 3), keepdims=True)
    return bn_gamma[None, :, None, None] * (y - mean) / jnp.sqrt(var + EPS) \
        + bn_beta[None, :, None, None]


if __name__ == "__main__":
    # Small shapes consistent with the module: N=2, Cin=4, Cout=8, H=W=16.
    N, Cin, Cout, H, W = 2, 4, 8, 16, 16

    key = jax.random.PRNGKey(0)
    kx, kw, kb, kg, kbe = jax.random.split(key, 5)

    x = jax.random.normal(kx, (N, Cin, H, W), dtype=jnp.float32)
    conv_w = jax.random.normal(kw, (Cout, Cin, 1, 1), dtype=jnp.float32) * 0.1
    conv_b = jax.random.normal(kb, (Cout,), dtype=jnp.float32) * 0.1
    bn_gamma = 1.0 + 0.1 * jax.random.normal(kg, (Cout,), dtype=jnp.float32)
    bn_beta = 0.1 * jax.random.normal(kbe, (Cout,), dtype=jnp.float32)

    out = res_shortcut(x, conv_w, conv_b, bn_gamma, bn_beta)
    out = jax.block_until_ready(out)

    ref = _reference(x, conv_w, conv_b, bn_gamma, bn_beta)
    assert out.shape == (N, Cout, H, W)
    assert jnp.allclose(out, ref, atol=1e-4, rtol=1e-4), \
        float(jnp.max(jnp.abs(out - ref)))

    print("KERNEL_OK")
</pallas_src>

<mosaic_0001>
module attributes {stable_mosaic.version = 11 : i64} {
  func.func @_stats_kernel(%arg0: i32, %arg1: i32, %arg2: i32, %arg3: memref<1x4x256xf32, #tpu.memory_space<vmem>>, %arg4: memref<1x1x4x4xf32, #tpu.memory_space<vmem>>, %arg5: memref<1x1x4x1xf32, #tpu.memory_space<vmem>>) attributes {dimension_semantics = [#tpu.dimension_semantics<parallel>, #tpu.dimension_semantics<parallel>, #tpu.dimension_semantics<arbitrary>], iteration_bounds = array<i64: 2, 1, 1>, scalar_prefetch = 0 : i64, scratch_operands = 0 : i64, tpu.core_type = #tpu.core_type<tc>, window_params = [{transform_indices = @transform_0, window_bounds = array<i64: 1, 4, 256>}, {transform_indices = @transform_1, window_bounds = array<i64: 1, 1, 4, 4>}, {transform_indices = @transform_2, window_bounds = array<i64: 1, 1, 4, 1>}]} {
    %c0_i32 = arith.constant 0 : i32
    %0 = arith.cmpi eq, %arg2, %c0_i32 : i32
    %1 = arith.extui %0 : i1 to i32
    %c0_i32_0 = arith.constant 0 : i32
    %2 = arith.cmpi ne, %1, %c0_i32_0 : i32
    scf.if %2 {
      %cst_20 = arith.constant 0.000000e+00 : f32
      %20 = vector.broadcast %cst_20 : f32 to vector<4x4xf32>
      %c0_21 = arith.constant 0 : index
      %c0_22 = arith.constant 0 : index
      %c0_23 = arith.constant 0 : index
      %c0_24 = arith.constant 0 : index
      %21 = vector.load %arg4[%c0_21, %c0_22, %c0_23, %c0_24] : memref<1x1x4x4xf32, #tpu.memory_space<vmem>>, vector<1x1x4x4xf32>
      %22 = vector.shape_cast %21 : vector<1x1x4x4xf32> to vector<4x4xf32>
      %23 = vector.shape_cast %20 : vector<4x4xf32> to vector<1x1x4x4xf32>
      tpu.vector_store %arg4[%c0_21, %c0_22, %c0_23, %c0_24], %23 {strides = array<i32>} : memref<1x1x4x4xf32, #tpu.memory_space<vmem>>, vector<1x1x4x4xf32>,
      %cst_25 = arith.constant 0.000000e+00 : f32
      %24 = vector.broadcast %cst_25 : f32 to vector<4x1xf32>
      %c0_26 = arith.constant 0 : index
      %c0_27 = arith.constant 0 : index
      %c0_28 = arith.constant 0 : index
      %c0_29 = arith.constant 0 : index
      %25 = vector.load %arg5[%c0_26, %c0_27, %c0_28, %c0_29] : memref<1x1x4x1xf32, #tpu.memory_space<vmem>>, vector<1x1x4x1xf32>
      %26 = vector.shape_cast %25 : vector<1x1x4x1xf32> to vector<4x1xf32>
      %27 = vector.shape_cast %24 : vector<4x1xf32> to vector<1x1x4x1xf32>
      tpu.vector_store %arg5[%c0_26, %c0_27, %c0_28, %c0_29], %27 {strides = array<i32>} : memref<1x1x4x1xf32, #tpu.memory_space<vmem>>, vector<1x1x4x1xf32>,
    } else {
    }
    %c0 = arith.constant 0 : index
    %c0_1 = arith.constant 0 : index
    %c0_2 = arith.constant 0 : index
    %3 = vector.load %arg3[%c0, %c0_1, %c0_2] : memref<1x4x256xf32, #tpu.memory_space<vmem>>, vector<1x4x256xf32>
    %4 = vector.shape_cast %3 : vector<1x4x256xf32> to vector<4x256xf32>
    %c0_3 = arith.constant 0 : index
    %c0_4 = arith.constant 0 : index
    %c0_5 = arith.constant 0 : index
    %c0_6 = arith.constant 0 : index
    %5 = vector.load %arg4[%c0_3, %c0_4, %c0_5, %c0_6] : memref<1x1x4x4xf32, #tpu.memory_space<vmem>>, vector<1x1x4x4xf32>
    %6 = vector.shape_cast %5 : vector<1x1x4x4xf32> to vector<4x4xf32>
    %cst = arith.constant dense<0.000000e+00> : vector<4x4xf32>
    %7 = tpu.matmul %4, %4, %cst {dimension_numbers = #tpu.dot_dimension_numbers<[1], [1], [0], [0], [0, 0, 1, 0], [], []>} : vector<4x256xf32>, vector<4x256xf32>, vector<4x4xf32> -> vector<4x4xf32>
    %8 = arith.addf %6, %7 : vector<4x4xf32>
    %c0_7 = arith.constant 0 : index
    %c0_8 = arith.constant 0 : index
    %c0_9 = arith.constant 0 : index
    %c0_10 = arith.constant 0 : index
    %9 = vector.load %arg4[%c0_7, %c0_8, %c0_9, %c0_10] : memref<1x1x4x4xf32, #tpu.memory_space<vmem>>, vector<1x1x4x4xf32>
    %10 = vector.shape_cast %9 : vector<1x1x4x4xf32> to vector<4x4xf32>
    %11 = vector.shape_cast %8 : vector<4x4xf32> to vector<1x1x4x4xf32>
    tpu.vector_store %arg4[%c0_7, %c0_8, %c0_9, %c0_10], %11 {strides = array<i32>} : memref<1x1x4x4xf32, #tpu.memory_space<vmem>>, vector<1x1x4x4xf32>,
    %c0_11 = arith.constant 0 : index
    %c0_12 = arith.constant 0 : index
    %c0_13 = arith.constant 0 : index
    %c0_14 = arith.constant 0 : index
    %12 = vector.load %arg5[%c0_11, %c0_12, %c0_13, %c0_14] : memref<1x1x4x1xf32, #tpu.memory_space<vmem>>, vector<1x1x4x1xf32>
    %13 = vector.shape_cast %12 : vector<1x1x4x1xf32> to vector<4x1xf32>
    %cst_15 = arith.constant dense<0.000000e+00> : vector<4xf32>
    %14 = vector.multi_reduction <add>, %4, %cst_15 [1] : vector<4x256xf32> to vector<4xf32>
    %15 = vector.shape_cast %14 : vector<4xf32> to vector<4x1xf32>
    %16 = arith.addf %13, %15 : vector<4x1xf32>
    %c0_16 = arith.constant 0 : index
    %c0_17 = arith.constant 0 : index
    %c0_18 = arith.constant 0 : index
    %c0_19 = arith.constant 0 : index
    %17 = vector.load %arg5[%c0_16, %c0_17, %c0_18, %c0_19] : memref<1x1x4x1xf32, #tpu.memory_space<vmem>>, vector<1x1x4x1xf32>
    %18 = vector.shape_cast %17 : vector<1x1x4x1xf32> to vector<4x1xf32>
    %19 = vector.shape_cast %16 : vector<4x1xf32> to vector<1x1x4x1xf32>
    tpu.vector_store %arg5[%c0_16, %c0_17, %c0_18, %c0_19], %19 {strides = array<i32>} : memref<1x1x4x1xf32, #tpu.memory_space<vmem>>, vector<1x1x4x1xf32>,
    return
  }
  func.func @transform_0(%arg0: i32, %arg1: i32, %arg2: i32) -> (i32, i32, i32) {
    %c1_i32 = arith.constant 1 : i32
    %0 = arith.muli %arg1, %c1_i32 : i32
    %1 = arith.addi %0, %arg2 : i32
    %c0_i32 = arith.constant 0 : i32
    %c0_i32_0 = arith.constant 0 : i32
    return %arg0, %c0_i32, %1 : i32, i32, i32
  }
  func.func @transform_1(%arg0: i32, %arg1: i32, %arg2: i32) -> (i32, i32, i32, i32) {
    %c0_i32 = arith.constant 0 : i32
    %c0_i32_0 = arith.constant 0 : i32
    %c0_i32_1 = arith.constant 0 : i32
    return %arg0, %arg1, %c0_i32, %c0_i32_0 : i32, i32, i32, i32
  }
  func.func @transform_2(%arg0: i32, %arg1: i32, %arg2: i32) -> (i32, i32, i32, i32) {
    %c0_i32 = arith.constant 0 : i32
    %c0_i32_0 = arith.constant 0 : i32
    %c0_i32_1 = arith.constant 0 : i32
    return %arg0, %arg1, %c0_i32, %c0_i32_0 : i32, i32, i32, i32
  }
}

</mosaic_0001>

<llo_original>
// kernel: tpu_custom_call.1
$region0: #{tpu_custom_call.1}
  #allocation0 [shape = 'u32[]', space=smem, size = 0x4, offset = 0x4, fixed_abs, tag = 'smem constant byte address 0x4 - core index']
  #allocation1 [shape = 'u32[144,128]{1,0:T(1,128)}', space=vmem, size = 0x12000, scoped, tag = 'internal scratch']
  %s0 = inlined_call_operand.hbm [shape: f32[2,4,256], index: 0, kind: input, shape index: {}]
  %s1 = inlined_call_operand.hbm [shape: f32[2,1,4,4], index: 1, kind: output, shape index: {0}]
  %s2 = inlined_call_operand.vmem [shape: f32[2,1,4,1], index: 2, kind: output, shape index: {1}]
  %3 = xla_tuple %s1, %s2
  %s4 = sld [smem:[#allocation0]]
  $region53: #{tpu_custom_call.1} parent=0
    _
  %s6 = ssub.s32 1, %s4
  %s7 = scalar_select 0, %s6, %s4
  $region1: #{tpu_custom_call.1} parent=0
    #allocation2 [shape = 'u8[8192]{0}', space=vmem, size = 0x2000, scoped, tag = 'input window, operand 0']
    #allocation3 [shape = 's32[2]{0}', space=sflag, size = 0x8, scoped, tag = 'scoped memory for tpu_custom_call.1']
    #allocation4 [shape = 's32[2]{0}', space=sflag, size = 0x8, scoped, tag = 'scoped memory for tpu_custom_call.1']
    #allocation5 [shape = 'u8[4096]{0}', space=vmem, size = 0x1000, scoped, tag = 'output window, operand 0']
    %8 = vsyncpa [#allocation3], 0
    %s9 = scalar_lea.sflag [#allocation3], 1
    %10 = vsyncpa %s9, 0
    %11 = vsyncpa [#allocation4], 0
    %s12 = scalar_lea.sflag [#allocation4], 1
    %13 = vsyncpa %s12, 0
    loop: start=0, step=1, limit=4
    $region2: #{tpu_custom_call.1} parent=1 // loop_pre_header
      _
    $region3: #{tpu_custom_call.1} parent=1 // loop_header
      %s15 = sphi 0, %s19
      %p16 = scmp.ge.s32.totalorder %s15, 4
      %s22 = sphi 0, %s41
      %s23 = sphi 0, %s37
      %s24 = sphi 0, %s33
      %s25 = sphi 0, %s22
      %s26 = sphi 0, %s23
      %s27 = sphi 0, %s24
      %s28 = sphi 0, %s25
      %s29 = sphi 0, %s26
      %s30 = sphi 0, %s27
      %s48 = sphi 0, %s50
      %s51 = sphi 0, %s48
      %s52 = sphi 0, %s51
      %s68 = sphi 0, %s52
      %s76 = sphi 0, %s78
      %s79 = sphi 0, %s76
      %s80 = sphi 0, %s79
      %s96 = sphi 0, %s80
      %s104 = sphi 0, %s106
      %s107 = sphi 0, %s104
      %s108 = sphi 0, %s107
      %s124 = sphi 0, %s108
    $region4: #{tpu_custom_call.1} parent=1 // loop_header_branch
      %18 = sbr.rel (%p16) target = $region8
    $region5: #{tpu_custom_call.1} parent=1 // loop_body
      %s20 = ssub.s32 %s15, 1
      %s21 = ssub.s32 %s15, 2
      %s31 = sadd.s32 1, %s24
      %p32 = scmp.ge.s32.totalorder %s31, 1
      %s33 = scalar_select %p32, 0, %s31
      %s34 = sadd.s32 1, %s23
      %s35 = scalar_select %p32, %s34, %s23
      %p36 = scmp.ge.s32.totalorder %s35, 1
      %s37 = scalar_select %p36, 0, %s35
      %s38 = sadd.s32 1, %s22
      %s39 = scalar_select %p36, %s38, %s22
      %p40 = scmp.ge.s32.totalorder %s39, 2
      %s41 = scalar_select %p40, 0, %s39
      %s42 = sadd.s32 %s23, %s24
      %s43 = sadd.s32 %s37, %s33
      %s44 = ssub.s32 %s22, %s41
      %s45 = ssub.s32 %s42, %s43
      %s46 = sor.u32 %s44, %s45
      %p47 = scmp.eq.s32.totalorder %s46, 0
      %s49 = sadd.s32 %s48, 1
      %s50 = scalar_select %p47, %s48, %s49
      %p53 = pneg %p47
      %p54 = scmp.eq.s32.totalorder %s15, 1
      %p55 = por %p53, %p54
      %p56 = scmp.ne.s32.totalorder %s48, %s51
      %p57 = scmp.eq.s32.totalorder %s15, 0
      %p58 = por %p56, %p57
      %p59 = scmp.ne.s32.totalorder %s48, %s51
      %p60 = scmp.eq.s32.totalorder %s20, 1
      %p61 = por %p59, %p60
      %p62 = scmp.ne.s32.totalorder %s51, %s52
      %p63 = scmp.eq.s32.totalorder %s20, 0
      %p64 = por %p62, %p63
      %p65 = scmp.ne.s32.totalorder %s51, %s52
      %p66 = scmp.eq.s32.totalorder %s21, 1
      %p67 = por %p65, %p66
      %p69 = scmp.ne.s32.totalorder %s52, %s68
      %p70 = scmp.eq.s32.totalorder %s21, 0
      %p71 = por %p69, %p70
      %s72 = ssub.s32 %s22, %s41
      %s73 = ssub.s32 %s23, %s37
      %s74 = sor.u32 %s72, %s73
      %p75 = scmp.eq.s32.totalorder %s74, 0
      %s77 = sadd.s32 %s76, 1
      %s78 = scalar_select %p75, %s76, %s77
      %p81 = pneg %p75
      %p82 = scmp.eq.s32.totalorder %s15, 1
      %p83 = por %p81, %p82
      %p84 = scmp.ne.s32.totalorder %s76, %s79
      %p85 = scmp.eq.s32.totalorder %s15, 0
      %p86 = por %p84, %p85
      %p87 = scmp.ne.s32.totalorder %s76, %s79
      %p88 = scmp.eq.s32.totalorder %s20, 1
      %p89 = por %p87, %p88
      %p90 = scmp.ne.s32.totalorder %s79, %s80
      %p91 = scmp.eq.s32.totalorder %s20, 0
      %p92 = por %p90, %p91
      %p93 = scmp.ne.s32.totalorder %s79, %s80
      %p94 = scmp.eq.s32.totalorder %s21, 1
      %p95 = por %p93, %p94
      %p97 = scmp.ne.s32.totalorder %s80, %s96
      %p98 = scmp.eq.s32.totalorder %s21, 0
      %p99 = por %p97, %p98
      %s100 = ssub.s32 %s22, %s41
      %s101 = ssub.s32 %s23, %s37
      %s102 = sor.u32 %s100, %s101
      %p103 = scmp.eq.s32.totalorder %s102, 0
      %s105 = sadd.s32 %s104, 1
      %s106 = scalar_select %p103, %s104, %s105
      %p109 = pneg %p103
      %p110 = scmp.eq.s32.totalorder %s15, 1
      %p111 = por %p109, %p110
      %p112 = scmp.ne.s32.totalorder %s104, %s107
      %p113 = scmp.eq.s32.totalorder %s15, 0
      %p114 = por %p112, %p113
      %p115 = scmp.ne.s32.totalorder %s104, %s107
      %p116 = scmp.eq.s32.totalorder %s20, 1
      %p117 = por %p115, %p116
      %p118 = scmp.ne.s32.totalorder %s107, %s108
      %p119 = scmp.eq.s32.totalorder %s20, 0
      %p120 = por %p118, %p119
      %p121 = scmp.ne.s32.totalorder %s107, %s108
      %p122 = scmp.eq.s32.totalorder %s21, 1
      %p123 = por %p121, %p122
      %p125 = scmp.ne.s32.totalorder %s108, %s124
      %p126 = scmp.eq.s32.totalorder %s21, 0
      %p127 = por %p125, %p126
      %p128 = scmp.le.s32.totalorder 1, %s15
      %p129 = scmp.lt.s32.totalorder %s15, 3
      %p130 = pnand %p128, %p129
      %p131 = pneg %p130
      // Predicated region
      $region9: #{tpu_custom_call.1} parent=5 // pred_check
        _
      $region10: #{tpu_custom_call.1} parent=5 // pred_check_branch
        %133 = sbr.rel (%p130) target = $region12
      $region11: #{tpu_custom_call.1} parent=5 // pred_region
        %s134 = ssub.s32 %s15, 1
      $region12: #{tpu_custom_call.1} parent=5 // pred_fallthru
        _
      %p135 = scmp.lt.s32.totalorder %s15, 2
      // Predicated region
      $region13: #{tpu_custom_call.1} parent=5 // pred_check
        %p136 = pneg %p135
      $region14: #{tpu_custom_call.1} parent=5 // pred_check_branch
        %138 = sbr.rel (%p136) target = $region16
      $region15: #{tpu_custom_call.1} parent=5 // pred_region
        // Predicated region
        $region17: #{tpu_custom_call.1} parent=15 // pred_check
          %p139 = pneg %p58
        $region18: #{tpu_custom_call.1} parent=15 // pred_check_branch
          %141 = sbr.rel (%p139) target = $region20
        $region19: #{tpu_custom_call.1} parent=15 // pred_region
          %s142 = sand.u32 %s48, 1
          %s143 = scalar_lea.sflag [#allocation3], %s142
          %s144 = sand.u32 %s48, 1
          %s145 = smul.addr %s144, 8
          %s146 = scalar_lea.vmem [#allocation2], %s145
          %s147 = sadd.s32 %s23, %s24
          %s148 = smul.u32 2, %s147
          %s150 = ssub.s32 128, 128
          %151 = vsyncadd %s143, %s150
          %s152 = smul.addr %s22, 2
          %s153 = sadd.s32 %s148, %s152
          %s154 = smul.addr %s153, 64
          %s155 = scalar_lea.hbm %s0, %s154
          %s157 = sshll.u32 %s146, 4
          %s158 = int_to_ptr.vmem [resolvable:$true] %s157
          %160 = dma.hbm_to_vmem [thread:$0]  %s155, 128, %s158, %s143
        $region20: #{tpu_custom_call.1} parent=15 // pred_fallthru
          _
      $region16: #{tpu_custom_call.1} parent=5 // pred_fallthru
        _
      %p161 = scmp.le.s32.totalorder 1, %s15
      %p162 = scmp.lt.s32.totalorder %s15, 3
      %p163 = pnand %p161, %p162
      %p164 = pneg %p163
      // Predicated region
      $region21: #{tpu_custom_call.1} parent=5 // pred_check
        _
      $region22: #{tpu_custom_call.1} parent=5 // pred_check_branch
        %166 = sbr.rel (%p163) target = $region24
      $region23: #{tpu_custom_call.1} parent=5 // pred_region
        %s167 = ssub.s32 %s15, 1
        %s168 = sand.u32 %s51, 1
        %s169 = scalar_lea.sflag [#allocation3], %s168
        %s170 = sand.u32 %s51, 1
        %s171 = smul.addr %s170, 8
        %s172 = scalar_lea.vmem [#allocation2], %s171
        // Predicated region
        $region25: #{tpu_custom_call.1} parent=23 // pred_check
          %p173 = pneg %p64
        $region26: #{tpu_custom_call.1} parent=23 // pred_check_branch
          %175 = sbr.rel (%p173) target = $region28
        $region27: #{tpu_custom_call.1} parent=23 // pred_region
          %176 = dma.done %s169, 128
        $region28: #{tpu_custom_call.1} parent=23 // pred_fallthru
          _
        %s177 = sand.u32 %s51, 1
        %s178 = scalar_lea.sflag [#allocation3], %s177
        %s179 = sand.u32 %s51, 1
        %s180 = smul.addr %s179, 8
        %s181 = scalar_lea.vmem [#allocation2], %s180
        %p182 = pneg %p64
        %p183 = pneg %p61
        %p184 = pneg %p92
        %p185 = pneg %p89
        %s186 = sand.u32 %s79, 1
        %s187 = scalar_lea.sflag [#allocation4], %s186
        %s188 = sand.u32 %s79, 1
        %s189 = smul.addr %s188, 4
        %s190 = scalar_lea.vmem [#allocation5], %s189
        %p191 = pneg %p120
        %p192 = pneg %p117
        %p193 = scmp.lt.s32.totalorder %s25, 1
        %s194 = scalar_select %p193, %s25, 1
        %p195 = scmp.lt.s32.totalorder %s26, 0
        %s196 = scalar_select %p195, %s26, 0
        %s197 = sadd.s32 %s196, %s194
        %s198 = smul.addr %s197, 4
        %s199 = scalar_lea.vmem %s2, %s198
        %s200 = sadd.s32 %s26, %s27
        %s201 = smul.u32 2, %s200
        %p202 = scmp.lt.s32.totalorder %s25, 1
        %s203 = scalar_select %p202, %s25, 1
        %p204 = scmp.lt.s32.totalorder %s26, 0
        %s205 = scalar_select %p204, %s26, 0
        %s206 = sadd.s32 %s205, %s203
        %s207 = smul.addr %s206, 4
        %s208 = scalar_lea.vmem %s2, %s207
        %p209 = scmp.eq.s32.totalorder %s27, 0
        // Predicated region
        $region29: #{tpu_custom_call.1} parent=23 // pred_check
          %p210 = pneg %p209
        $region30: #{tpu_custom_call.1} parent=23 // pred_check_branch
          %212 = sbr.rel (%p210) target = $region32
        $region31: #{tpu_custom_call.1} parent=23 // pred_region
          %vm213 = vcmask 27648
          %214 = vst.msk [vmem:[%s190] sm:$0xf] %vm213, 0.0
          %vm215 = vcmask 3072
          %216 = vst.msk [vmem:[%s208] sm:$0xf] %vm215, 0.0
        $region32: #{tpu_custom_call.1} parent=23 // pred_fallthru
          _
        %v217 = vld [vmem:[%s172] sm:$0xff]
        %v218 = vld [vmem:[%s190] sm:$0xf]
        %v220 = vcombine.high %v217, %v217
        %222 = vmatprep.subr.mxu0 0.0
        %223 = vmatpush1.xpose.msra.mxu0 0.0
        %224 = vmatprep.subr.mxu0 0.0
        %225 = vmatpush1.xpose.msra.mxu0 0.0
        %226 = vmatprep.subr.mxu0 0.0
        %227 = vmatpush1.xpose.msra.mxu0 0.0
        %228 = vmatprep.subr.mxu0 0.0
        %229 = vmatpush1.xpose.msra.mxu0 0.0
        %230 = vmatprep.subr.mxu0 0.0
        %231 = vmatpush1.xpose.msra.mxu0 0.0
        %232 = vmatprep.subr.mxu0 0.0
        %233 = vmatpush1.xpose.msra.mxu0 0.0
        %234 = vmatprep.subr.mxu0 0.0
        %235 = vmatpush1.xpose.msra.mxu0 0.0
        %236 = vmatprep.subr.mxu0 0.0
        %237 = vmatpush1.xpose.msra.mxu0 0.0
        %238 = vmatprep.subr.mxu0 0.0
        %239 = vmatpush1.xpose.msra.mxu0 0.0
        %240 = vmatprep.subr.mxu0 0.0
        %241 = vmatpush1.xpose.msra.mxu0 0.0
        %242 = vmatprep.subr.mxu0 0.0
        %243 = vmatpush1.xpose.msra.mxu0 0.0
        %244 = vmatprep.subr.mxu0 0.0
        %245 = vmatpush1.xpose.msra.mxu0 0.0
        %246 = vmatprep.subr.mxu0 0.0
        %247 = vmatpush1.xpose.msra.mxu0 0.0
        %248 = vmatprep.subr.mxu0 0.0
        %249 = vmatpush1.xpose.msra.mxu0 0.0
        %250 = vmatprep.subr.mxu0 0.0
        %251 = vmatpush1.xpose.msra.mxu0 0.0
        %252 = vmatprep.subr.mxu0 %v220
        %253 = vmatpush1.xpose.msra.mxu0 %v217
        %254 = vmatprep.subr.mxu0 0.0
        %255 = vmatpush2.xpose.msra.mxu0 0.0
        %256 = vmatprep.subr.mxu0 0.0
        %257 = vmatpush2.xpose.msra.mxu0 0.0
        %258 = vmatprep.subr.mxu0 0.0
        %259 = vmatpush2.xpose.msra.mxu0 0.0
        %260 = vmatprep.subr.mxu0 0.0
        %261 = vmatpush2.xpose.msra.mxu0 0.0
        %262 = vmatprep.subr.mxu0 0.0
        %263 = vmatpush2.xpose.msra.mxu0 0.0
        %264 = vmatprep.subr.mxu0 0.0
        %265 = vmatpush2.xpose.msra.mxu0 0.0
        %266 = vmatprep.subr.mxu0 0.0
        %267 = vmatpush2.xpose.msra.mxu0 0.0
        %268 = vmatprep.subr.mxu0 0.0
        %269 = vmatpush2.xpose.msra.mxu0 0.0
        %270 = vmatprep.subr.mxu0 0.0
        %271 = vmatpush2.xpose.msra.mxu0 0.0
        %272 = vmatprep.subr.mxu0 0.0
        %273 = vmatpush2.xpose.msra.mxu0 0.0
        %274 = vmatprep.subr.mxu0 0.0
        %275 = vmatpush2.xpose.msra.mxu0 0.0
        %276 = vmatprep.subr.mxu0 0.0
        %277 = vmatpush2.xpose.msra.mxu0 0.0
        %278 = vmatprep.subr.mxu0 0.0
        %279 = vmatpush2.xpose.msra.mxu0 0.0
        %280 = vmatprep.subr.mxu0 0.0
        %281 = vmatpush2.xpose.msra.mxu0 0.0
        %282 = vmatprep.subr.mxu0 0.0
        %283 = vmatpush2.xpose.msra.mxu0 0.0
        %284 = vmatprep.subr.mxu0 0.0
        %285 = vmatpush2.xpose.msra.mxu0 0.0
        %286 = vmatprep.mubr.f32.mxu0 %v220
        %287 = vmatmul.mubr.f32.gmra.mxu0 %v217
        %v288 = vpop.f32.mrf.mxu0
        %v289 = vadd.f32 0.0, %v288
        %v290 = vpop.f32.mrf.mxu0
        %291 = vdwg.mxu0
        %v292 = vadd.f32 %v218, %v289
        %vm293 = vcmask 27648
        %294 = vst.msk [vmem:[%s190] sm:$0xf] %vm293, %v292
        %v295 = vld [vmem:[%s208] sm:$0xf]
        %vm296 = vcmask 1043456
        %v297 = vsel %vm296, %v217, 0.0
        %v298 = vsel %vm296, %v220, 0.0
        %v299 = vadd.f32 %v297, %v298
        %300 = vadd.xlane.f32.xlu0 %v299
        %v301 = vpop.xlane.xlu0 %300
        %v302 = vadd.f32 %v295, %v301
        %vm303 = vcmask 3072
        %304 = vst.msk [vmem:[%s208] sm:$0xf] %vm303, %v302
        %s305 = sand.u32 %s79, 1
        %s306 = scalar_lea.sflag [#allocation4], %s305
        %s307 = sand.u32 %s79, 1
        %s308 = smul.addr %s307, 4
        %s309 = scalar_lea.vmem [#allocation5], %s308
        %p310 = scmp.lt.s32.totalorder %s25, 1
        %s311 = scalar_select %p310, %s25, 1
        %p312 = scmp.lt.s32.totalorder %s26, 0
        %s313 = scalar_select %p312, %s26, 0
        %s314 = sadd.s32 %s313, %s311
        %s315 = smul.addr %s314, 4
        %s316 = scalar_lea.vmem %s2, %s315
        // Predicated region
        $region33: #{tpu_custom_call.1} parent=23 // pred_check
          %p317 = pneg %p89
        $region34: #{tpu_custom_call.1} parent=23 // pred_check_branch
          %319 = sbr.rel (%p317) target = $region36
        $region35: #{tpu_custom_call.1} parent=23 // pred_region
          %s321 = ssub.s32 64, 64
          %322 = vsyncadd %s306, %s321
          %s323 = sadd.s32 %s26, %s25
          %s324 = smul.addr %s323, 64
          %s325 = scalar_lea.hbm %s1, %s324
          %s327 = sshll.u32 %s309, 4
          %s328 = int_to_ptr.vmem [resolvable:$true] %s327
          %330 = dma.vmem_to_hbm [thread:$0]  %s328, 64, %s325, %s306
        $region36: #{tpu_custom_call.1} parent=23 // pred_fallthru
          _
        // Predicated region
        $region37: #{tpu_custom_call.1} parent=23 // pred_check
          %p331 = pneg %p117
        $region38: #{tpu_custom_call.1} parent=23 // pred_check_branch
          %333 = sbr.rel (%p331) target = $region40
        $region39: #{tpu_custom_call.1} parent=23 // pred_region
          _
        $region40: #{tpu_custom_call.1} parent=23 // pred_fallthru
          _
      $region24: #{tpu_custom_call.1} parent=5 // pred_fallthru
        _
      %p334 = scmp.le.s32.totalorder 2, %s15
      // Predicated region
      $region41: #{tpu_custom_call.1} parent=5 // pred_check
        %p335 = pneg %p334
      $region42: #{tpu_custom_call.1} parent=5 // pred_check_branch
        %337 = sbr.rel (%p335) target = $region44
      $region43: #{tpu_custom_call.1} parent=5 // pred_region
        %s338 = ssub.s32 %s15, 2
        // Predicated region
        $region45: #{tpu_custom_call.1} parent=43 // pred_check
          %p339 = pneg %p95
        $region46: #{tpu_custom_call.1} parent=43 // pred_check_branch
          %341 = sbr.rel (%p339) target = $region48
        $region47: #{tpu_custom_call.1} parent=43 // pred_region
          %s342 = sand.u32 %s80, 1
          %s343 = scalar_lea.sflag [#allocation4], %s342
          %s344 = sand.u32 %s80, 1
          %s345 = smul.addr %s344, 4
          %s346 = scalar_lea.vmem [#allocation5], %s345
          %347 = dma.done %s343, 64
        $region48: #{tpu_custom_call.1} parent=43 // pred_fallthru
          _
        // Predicated region
        $region49: #{tpu_custom_call.1} parent=43 // pred_check
          %p348 = pneg %p123
        $region50: #{tpu_custom_call.1} parent=43 // pred_check_branch
          %350 = sbr.rel (%p348) target = $region52
        $region51: #{tpu_custom_call.1} parent=43 // pred_region
          %p351 = scmp.lt.s32.totalorder %s28, 1
          %s352 = scalar_select %p351, %s28, 1
          %p353 = scmp.lt.s32.totalorder %s29, 0
          %s354 = scalar_select %p353, %s29, 0
          %s355 = sadd.s32 %s354, %s352
          %s356 = smul.addr %s355, 4
          %s357 = scalar_lea.vmem %s2, %s356
        $region52: #{tpu_custom_call.1} parent=43 // pred_fallthru
          _
      $region44: #{tpu_custom_call.1} parent=5 // pred_fallthru
        _
    $region6: #{tpu_custom_call.1} parent=1 // loop_footer
      %s19 = sadd.s32 1, %s15
    $region7: #{tpu_custom_call.1} parent=1 // loop_footer_branch
      %14 = sbr.rel target = $region3
    $region8: #{tpu_custom_call.1} parent=1 // loop_exit
      _
    %358 = vsyncpa [#allocation3], 1
    %s359 = scalar_lea.sflag [#allocation3], 1
    %360 = vsyncpa %s359, 1
    %361 = vsyncpa [#allocation4], 1
    %s362 = scalar_lea.sflag [#allocation4], 1
    %363 = vsyncpa %s362, 1

</llo_original>
